<compile_context>
chip_gen: v7x
topology: tpu7x:2x2x1
jax: 0.10.0
libtpu: 0.0.40
codegen_flags: <defaults>
</compile_context>

<pallas_src>
import functools

import jax
import jax.numpy as jnp
from jax import lax
from jax.experimental import pallas as pl
from jax.experimental.pallas import tpu as pltpu

LN_EPS = 1e-5


def variance_predictor_kernel(x_ref,
                              w1_ref, b1_ref, g1_ref, be1_ref,
                              w2_ref, b2_ref, g2_ref, be2_ref,
                              wl_ref, bl_ref,
                              o_ref, *, true_f, mxu_dtype):
    bt, T, Cp = x_ref.shape
    R = bt * T
    Fp = wl_ref.shape[-1]

    # Flatten the (B_TILE, T) rows into one M dimension for the MXU.
    x = x_ref[...].astype(jnp.float32).reshape(R, Cp)

    # Per-row position within its own sequence (rows are (b, t) ordered).
    t_idx = lax.broadcasted_iota(jnp.int32, (R, 1), 0) % T
    is_first = t_idx == 0            # t == 0     -> no left neighbor
    is_last = t_idx == (T - 1)       # t == T - 1 -> no right neighbor

    inv_f = jnp.float32(1.0 / true_f)

    def conv_ln_relu(h, wk_ref, b_ref, g_ref, be_ref):
        # Shifted taps via a zero-row concat; boundary rows (including
        # cross-sequence boundaries inside a packed tile) are masked to zero,
        # which is exactly Conv1d's zero padding.
        z = jnp.zeros((1, h.shape[-1]), jnp.float32)
        h_m1 = jnp.where(is_first, 0.0, jnp.concatenate([z, h[:-1, :]], axis=0))
        h_p1 = jnp.where(is_last, 0.0, jnp.concatenate([h[1:, :], z], axis=0))

        # 3-tap conv folded into ONE matmul with K = 3 * Cin_pad.
        # bf16 (or f32) MXU inputs, f32 accumulation.
        hk = jnp.concatenate([h_m1, h, h_p1], axis=-1).astype(mxu_dtype)
        y = jnp.dot(hk, wk_ref[...],
                    preferred_element_type=jnp.float32) + b_ref[...]

        # LayerNorm over the TRUE channel count. Padded lanes of y are exactly
        # zero (zero-padded weight columns / bias), so plain lane sums divided
        # by true_f give the right biased statistics (matches torch LayerNorm).
        mean = jnp.sum(y, axis=-1, keepdims=True) * inv_f
        mean_sq = jnp.sum(y * y, axis=-1, keepdims=True) * inv_f
        var = mean_sq - mean * mean
        yn = (y - mean) * lax.rsqrt(var + LN_EPS) * g_ref[...] + be_ref[...]
        return jnp.maximum(yn, 0.0)

    h = conv_ln_relu(x, w1_ref, b1_ref, g1_ref, be1_ref)
    h = conv_ln_relu(h, w2_ref, b2_ref, g2_ref, be2_ref)

    # Linear(F, 1) + ReLU as a VPU multiply + lane reduction (padded wl lanes
    # are zero); output stored lane-dense with T on the lane axis.
    h3 = h.reshape(bt, T, Fp)
    out = jnp.sum(h3 * wl_ref[...], axis=-1) + bl_ref[...]      # (bt, T)
    o_ref[...] = jnp.maximum(out, 0.0)[None]                    # (1, bt, T)


def _round_up(n, m):
    return ((n + m - 1) // m) * m


def _pick_vmem_limit():
    """Generation-aware scoped-VMEM limit (about half of physical VMEM)."""
    try:
        vmem_bytes = int(pltpu.get_tpu_info().vmem_capacity_bytes)
    except Exception:
        vmem_bytes = 64 * 1024 * 1024      # conservative (v7x-sized) fallback
    return max(16 * 1024 * 1024, min(vmem_bytes // 2, 64 * 1024 * 1024))


def _row_budget(c_pad, f_pad, mxu_bytes, vmem_limit):
    """How many (batch*time) rows of live activations fit per grid step."""
    # x tile + folded hk (MXU dtype) + conv output / LN temporaries (f32),
    # with ~2x slack for Mosaic temporaries and double-buffered input DMA.
    per_row = 4 * c_pad + 3 * max(c_pad, f_pad) * mxu_bytes + 6 * 4 * f_pad
    return int(max(256, min((vmem_limit // 2) // max(per_row, 1), 8192)))


def _pick_b_tile(B, T, row_budget, min_grid_steps=2):
    """Batch rows packed per grid step.

    Fills the MXU M dimension without blowing VMEM, prefers sublane-aligned
    tiles, and keeps at least `min_grid_steps` grid steps when B allows so the
    "parallel" grid axis can shard across v7x's two TensorCores.
    """
    divisors = [d for d in range(1, B + 1) if B % d == 0]
    fitting = [d for d in divisors if d * T <= row_budget]
    if not fitting:
        # A single sequence already exceeds the row budget: one per step.
        # TODO(synk): halo-tile the T axis (1-row conv halos) for very long T.
        return 1
    if B >= min_grid_steps:
        capped = [d for d in fitting if B // d >= min_grid_steps]
        if capped:
            fitting = capped
    aligned = [d for d in fitting if d % 8 == 0]
    return max(aligned or fitting)


def variance_predictor(x, params, *, mxu_dtype=jnp.bfloat16):
    """x: (B, T, C) float32. Returns the eval-mode output: (1, B, T)."""
    B, T, C = x.shape
    F = params["w1"].shape[-1]

    Cp = _round_up(C, 128)
    Fp = _round_up(F, 128)
    mxu_bytes = jnp.dtype(mxu_dtype).itemsize

    vmem_limit = _pick_vmem_limit()
    row_budget = _row_budget(Cp, Fp, mxu_bytes, vmem_limit)
    bt = _pick_b_tile(B, T, row_budget)
    assert B % bt == 0
    num_tiles = B // bt

    # Pad channels to 128 lanes; cast x (and folded weights) to the MXU dtype.
    xp = x if Cp == C else jnp.pad(x, ((0, 0), (0, 0), (0, Cp - C)))
    xp = xp.astype(mxu_dtype)

    def fold_conv_w(w):        # (3, Cin, Cout) -> (3 * Cin_pad, Fp), MXU dtype
        _, cin, cout = w.shape
        cin_p = _round_up(cin, 128)
        wp = jnp.pad(w, ((0, 0), (0, cin_p - cin), (0, Fp - cout)))
        return wp.reshape(3 * cin_p, Fp).astype(mxu_dtype)

    def pad_row(v):            # (1, F) -> (1, Fp) f32, zero padded
        return jnp.pad(v, ((0, 0), (0, Fp - v.shape[-1]))).astype(jnp.float32)

    w1k = fold_conv_w(params["w1"])
    w2k = fold_conv_w(params["w2"])
    b1, g1, be1 = pad_row(params["b1"]), pad_row(params["g1"]), pad_row(params["be1"])
    b2, g2, be2 = pad_row(params["b2"]), pad_row(params["g2"]), pad_row(params["be2"])
    wl_row = pad_row(params["wl"].reshape(1, F))
    bl = params["bl"].astype(jnp.float32)                       # (1, 1)

    kernel = functools.partial(variance_predictor_kernel,
                               true_f=F, mxu_dtype=mxu_dtype)

    full = lambda shape: pl.BlockSpec(shape, lambda b: (0,) * len(shape))

    out = pl.pallas_call(
        kernel,
        out_shape=jax.ShapeDtypeStruct((num_tiles, bt, T), jnp.float32),
        grid_spec=pltpu.PrefetchScalarGridSpec(
            num_scalar_prefetch=0,
            grid=(num_tiles,),
            in_specs=[
                pl.BlockSpec((bt, T, Cp), lambda b: (b, 0, 0)),   # x tile
                full((3 * Cp, Fp)), full((1, Fp)), full((1, Fp)), full((1, Fp)),
                full((3 * Fp, Fp)), full((1, Fp)), full((1, Fp)), full((1, Fp)),
                full((1, Fp)), full((1, 1)),
            ],
            out_specs=pl.BlockSpec((1, bt, T), lambda b: (b, 0, 0)),
        ),
        compiler_params=pltpu.CompilerParams(
            dimension_semantics=("parallel",),
            vmem_limit_bytes=vmem_limit,
        ),
    )(xp, w1k, b1, g1, be1, w2k, b2, g2, be2, wl_row, bl)

    out = out.reshape(B, T)
    out = jnp.squeeze(out)          # matches torch .squeeze()
    return out[None]                # eval mode -> out.unsqueeze(0)


def variance_predictor_ref(x, params):
    """Pure-JAX f32 reference with identical math."""
    def layer(h, w, b, g, be):
        cin = h.shape[2]
        zrow = jnp.zeros((h.shape[0], 1, cin), h.dtype)
        hm1 = jnp.concatenate([zrow, h[:, :-1, :]], axis=1)
        hp1 = jnp.concatenate([h[:, 1:, :], zrow], axis=1)
        y = hm1 @ w[0] + h @ w[1] + hp1 @ w[2] + b
        mean = y.mean(-1, keepdims=True)
        var = ((y - mean) ** 2).mean(-1, keepdims=True)
        y = (y - mean) / jnp.sqrt(var + LN_EPS) * g + be
        return jnp.maximum(y, 0.0)

    h = layer(x, params["w1"], params["b1"], params["g1"], params["be1"])
    h = layer(h, params["w2"], params["b2"], params["g2"], params["be2"])
    o = jnp.maximum(h @ params["wl"] + params["bl"], 0.0)
    return jnp.squeeze(o)[None]


def make_params(key, encoder_dim, filter_size):
    ks = jax.random.split(key, 6)
    s1 = 1.0 / jnp.sqrt(3.0 * encoder_dim)
    s2 = 1.0 / jnp.sqrt(3.0 * filter_size)
    sl = 1.0 / jnp.sqrt(1.0 * filter_size)
    return {
        # conv weights stored as (kernel_tap, Cin, Cout)
        "w1": jax.random.uniform(ks[0], (3, encoder_dim, filter_size), jnp.float32, -s1, s1),
        "b1": jax.random.uniform(ks[1], (1, filter_size), jnp.float32, -s1, s1),
        "g1": jnp.ones((1, filter_size), jnp.float32),
        "be1": jnp.zeros((1, filter_size), jnp.float32),
        "w2": jax.random.uniform(ks[2], (3, filter_size, filter_size), jnp.float32, -s2, s2),
        "b2": jax.random.uniform(ks[3], (1, filter_size), jnp.float32, -s2, s2),
        "g2": jnp.ones((1, filter_size), jnp.float32),
        "be2": jnp.zeros((1, filter_size), jnp.float32),
        "wl": jax.random.uniform(ks[4], (filter_size, 1), jnp.float32, -sl, sl),
        "bl": jax.random.uniform(ks[5], (1, 1), jnp.float32, -sl, sl),
    }


if __name__ == "__main__":
    B, T = 2, 8
    encoder_dim = 32          # model_config.encoder_dim
    filter_size = 32          # model_config.duration_predictor_filter_size
    # kernel size = 3, padding = 1 (as in the module)

    key = jax.random.PRNGKey(0)
    kx, kp = jax.random.split(key)
    x = jax.random.normal(kx, (B, T, encoder_dim), jnp.float32)
    params = make_params(kp, encoder_dim, filter_size)

    ref = variance_predictor_ref(x, params)

    # f32 MXU path: tight structural/numerical check against the reference.
    out_f32 = jax.block_until_ready(variance_predictor(x, params, mxu_dtype=jnp.float32))
    assert out_f32.shape == (1, B, T), out_f32.shape
    assert jnp.allclose(out_f32, ref, atol=1e-4, rtol=1e-4), \
        float(jnp.max(jnp.abs(out_f32 - ref)))

    # bf16 MXU path (production config): looser tolerance purely from the
    # bf16 quantization of x / hk / conv weights (LN and output stay f32).
    out_bf16 = jax.block_until_ready(variance_predictor(x, params, mxu_dtype=jnp.bfloat16))
    assert out_bf16.shape == (1, B, T), out_bf16.shape
    assert jnp.allclose(out_bf16, ref, atol=5e-2, rtol=5e-2), \
        float(jnp.max(jnp.abs(out_bf16 - ref)))

    print("KERNEL_OK")
</pallas_src>

<mosaic_0001>
module attributes {stable_mosaic.version = 11 : i64} {
  func.func @variance_predictor_kernel(%arg0: i32, %arg1: memref<1x8x128xf32, #tpu.memory_space<vmem>>, %arg2: memref<384x128xf32, #tpu.memory_space<vmem>>, %arg3: memref<1x128xf32, #tpu.memory_space<vmem>>, %arg4: memref<1x128xf32, #tpu.memory_space<vmem>>, %arg5: memref<1x128xf32, #tpu.memory_space<vmem>>, %arg6: memref<384x128xf32, #tpu.memory_space<vmem>>, %arg7: memref<1x128xf32, #tpu.memory_space<vmem>>, %arg8: memref<1x128xf32, #tpu.memory_space<vmem>>, %arg9: memref<1x128xf32, #tpu.memory_space<vmem>>, %arg10: memref<1x128xf32, #tpu.memory_space<vmem>>, %arg11: memref<1x1xf32, #tpu.memory_space<vmem>>, %arg12: memref<1x1x8xf32, #tpu.memory_space<vmem>>) attributes {dimension_semantics = [#tpu.dimension_semantics<parallel>], iteration_bounds = array<i64: 2>, scalar_prefetch = 0 : i64, scratch_operands = 0 : i64, tpu.core_type = #tpu.core_type<tc>, window_params = [{transform_indices = @transform_0, window_bounds = array<i64: 1, 8, 128>}, {pipeline_mode = #tpu.pipeline_mode<synchronous>, transform_indices = @transform_1, window_bounds = array<i64: 384, 128>}, {pipeline_mode = #tpu.pipeline_mode<synchronous>, transform_indices = @transform_2, window_bounds = array<i64: 1, 128>}, {pipeline_mode = #tpu.pipeline_mode<synchronous>, transform_indices = @transform_3, window_bounds = array<i64: 1, 128>}, {pipeline_mode = #tpu.pipeline_mode<synchronous>, transform_indices = @transform_4, window_bounds = array<i64: 1, 128>}, {pipeline_mode = #tpu.pipeline_mode<synchronous>, transform_indices = @transform_5, window_bounds = array<i64: 384, 128>}, {pipeline_mode = #tpu.pipeline_mode<synchronous>, transform_indices = @transform_6, window_bounds = array<i64: 1, 128>}, {pipeline_mode = #tpu.pipeline_mode<synchronous>, transform_indices = @transform_7, window_bounds = array<i64: 1, 128>}, {pipeline_mode = #tpu.pipeline_mode<synchronous>, transform_indices = @transform_8, window_bounds = array<i64: 1, 128>}, {pipeline_mode = #tpu.pipeline_mode<synchronous>, transform_indices = @transform_9, window_bounds = array<i64: 1, 128>}, {pipeline_mode = #tpu.pipeline_mode<synchronous>, transform_indices = @transform_10, window_bounds = array<i64: 1, 1>}, {transform_indices = @transform_11, window_bounds = array<i64: 1, 1, 8>}]} {
    %c0 = arith.constant 0 : index
    %c0_0 = arith.constant 0 : index
    %c0_1 = arith.constant 0 : index
    %0 = vector.load %arg1[%c0, %c0_0, %c0_1] : memref<1x8x128xf32, #tpu.memory_space<vmem>>, vector<1x8x128xf32>
    %1 = vector.shape_cast %0 : vector<1x8x128xf32> to vector<8x128xf32>
    %2 = tpu.iota {dimensions = array<i32: 0>} : vector<8x1xi32>
    %c8_i32 = arith.constant 8 : i32
    %c0_i32 = arith.constant 0 : i32
    %3 = arith.cmpi eq, %c8_i32, %c0_i32 : i32
    %c1_i32 = arith.constant 1 : i32
    %4 = arith.select %3, %c1_i32, %c8_i32 : i32
    %5 = vector.broadcast %4 : i32 to vector<8x1xi32>
    %6 = arith.remsi %2, %5 : vector<8x1xi32>
    %c0_i32_2 = arith.constant 0 : i32
    %7 = vector.broadcast %c0_i32_2 : i32 to vector<8x1xi32>
    %8 = arith.cmpi ne, %6, %7 : vector<8x1xi32>
    %c0_i32_3 = arith.constant 0 : i32
    %9 = vector.broadcast %c0_i32_3 : i32 to vector<8x1xi32>
    %10 = arith.cmpi slt, %6, %9 : vector<8x1xi32>
    %c0_i32_4 = arith.constant 0 : i32
    %11 = arith.cmpi slt, %4, %c0_i32_4 : i32
    %12 = vector.broadcast %11 : i1 to vector<8x1xi1>
    %13 = vector.broadcast %12 : vector<8x1xi1> to vector<8x1xi1>
    %14 = arith.xori %10, %13 : vector<8x1xi1>
    %15 = arith.andi %14, %8 : vector<8x1xi1>
    %16 = vector.broadcast %4 : i32 to vector<8x1xi32>
    %17 = arith.addi %6, %16 : vector<8x1xi32>
    %18 = arith.select %15, %17, %6 : vector<8x1xi1>, vector<8x1xi32>
    %c0_i32_5 = arith.constant 0 : i32
    %19 = vector.broadcast %c0_i32_5 : i32 to vector<8x1xi32>
    %20 = arith.cmpi eq, %18, %19 : vector<8x1xi32>
    %c7_i32 = arith.constant 7 : i32
    %21 = vector.broadcast %c7_i32 : i32 to vector<8x1xi32>
    %22 = arith.cmpi eq, %18, %21 : vector<8x1xi32>
    %cst = arith.constant 0.000000e+00 : f32
    %23 = vector.broadcast %cst : f32 to vector<1x128xf32>
    %24 = vector.extract_strided_slice %1 {offsets = [0, 0], sizes = [7, 128], strides = [1, 1]} : vector<8x128xf32> to vector<7x128xf32>
    %25 = tpu.concatenate %23, %24 in 0 : vector<1x128xf32>, vector<7x128xf32> -> vector<8x128xf32>
    %cst_6 = arith.constant 0.000000e+00 : f32
    %26 = vector.shape_cast %20 : vector<8x1xi1> to vector<8x1xi1>
    %27 = vector.broadcast %26 : vector<8x1xi1> to vector<8x128xi1>
    %28 = vector.broadcast %cst_6 : f32 to vector<8x128xf32>
    %29 = arith.select %27, %28, %25 : vector<8x128xi1>, vector<8x128xf32>
    %30 = vector.extract_strided_slice %1 {offsets = [1, 0], sizes = [7, 128], strides = [1, 1]} : vector<8x128xf32> to vector<7x128xf32>
    %31 = tpu.concatenate %30, %23 in 0 : vector<7x128xf32>, vector<1x128xf32> -> vector<8x128xf32>
    %cst_7 = arith.constant 0.000000e+00 : f32
    %32 = vector.shape_cast %22 : vector<8x1xi1> to vector<8x1xi1>
    %33 = vector.broadcast %32 : vector<8x1xi1> to vector<8x128xi1>
    %34 = vector.broadcast %cst_7 : f32 to vector<8x128xf32>
    %35 = arith.select %33, %34, %31 : vector<8x128xi1>, vector<8x128xf32>
    %36 = tpu.concatenate %29, %1, %35 in 1 : vector<8x128xf32>, vector<8x128xf32>, vector<8x128xf32> -> vector<8x384xf32>
    %c0_8 = arith.constant 0 : index
    %c0_9 = arith.constant 0 : index
    %37 = vector.load %arg2[%c0_8, %c0_9] : memref<384x128xf32, #tpu.memory_space<vmem>>, vector<384x128xf32>
    %cst_10 = arith.constant dense<0.000000e+00> : vector<8x128xf32>
    %38 = tpu.matmul %36, %37, %cst_10 {dimension_numbers = #tpu.dot_dimension_numbers<[1], [0], [0], [1], [0, 0, 1, 1], [], []>} : vector<8x384xf32>, vector<384x128xf32>, vector<8x128xf32> -> vector<8x128xf32>
    %c0_11 = arith.constant 0 : index
    %c0_12 = arith.constant 0 : index
    %39 = vector.load %arg3[%c0_11, %c0_12] : memref<1x128xf32, #tpu.memory_space<vmem>>, vector<1x128xf32>
    %40 = vector.broadcast %39 : vector<1x128xf32> to vector<8x128xf32>
    %41 = arith.addf %38, %40 : vector<8x128xf32>
    %cst_13 = arith.constant dense<0.000000e+00> : vector<8xf32>
    %42 = vector.multi_reduction <add>, %41, %cst_13 [1] : vector<8x128xf32> to vector<8xf32>
    %43 = vector.shape_cast %42 : vector<8xf32> to vector<8x1xf32>
    %cst_14 = arith.constant 3.125000e-02 : f32
    %44 = vector.broadcast %cst_14 : f32 to vector<8x1xf32>
    %45 = arith.mulf %43, %44 : vector<8x1xf32>
    %46 = arith.mulf %41, %41 : vector<8x128xf32>
    %cst_15 = arith.constant dense<0.000000e+00> : vector<8xf32>
    %47 = vector.multi_reduction <add>, %46, %cst_15 [1] : vector<8x128xf32> to vector<8xf32>
    %48 = vector.shape_cast %47 : vector<8xf32> to vector<8x1xf32>
    %cst_16 = arith.constant 3.125000e-02 : f32
    %49 = vector.broadcast %cst_16 : f32 to vector<8x1xf32>
    %50 = arith.mulf %48, %49 : vector<8x1xf32>
    %51 = arith.mulf %45, %45 : vector<8x1xf32>
    %52 = arith.subf %50, %51 : vector<8x1xf32>
    %53 = vector.broadcast %45 : vector<8x1xf32> to vector<8x128xf32>
    %54 = arith.subf %41, %53 : vector<8x128xf32>
    %cst_17 = arith.constant 9.99999974E-6 : f32
    %55 = vector.broadcast %cst_17 : f32 to vector<8x1xf32>
    %56 = arith.addf %52, %55 : vector<8x1xf32>
    %57 = math.rsqrt %56 : vector<8x1xf32>
    %58 = vector.broadcast %57 : vector<8x1xf32> to vector<8x128xf32>
    %59 = arith.mulf %54, %58 : vector<8x128xf32>
    %c0_18 = arith.constant 0 : index
    %c0_19 = arith.constant 0 : index
    %60 = vector.load %arg4[%c0_18, %c0_19] : memref<1x128xf32, #tpu.memory_space<vmem>>, vector<1x128xf32>
    %61 = vector.broadcast %60 : vector<1x128xf32> to vector<8x128xf32>
    %62 = arith.mulf %59, %61 : vector<8x128xf32>
    %c0_20 = arith.constant 0 : index
    %c0_21 = arith.constant 0 : index
    %63 = vector.load %arg5[%c0_20, %c0_21] : memref<1x128xf32, #tpu.memory_space<vmem>>, vector<1x128xf32>
    %64 = vector.broadcast %63 : vector<1x128xf32> to vector<8x128xf32>
    %65 = arith.addf %62, %64 : vector<8x128xf32>
    %cst_22 = arith.constant 0.000000e+00 : f32
    %66 = vector.broadcast %cst_22 : f32 to vector<8x128xf32>
    %67 = arith.maximumf %65, %66 : vector<8x128xf32>
    %cst_23 = arith.constant 0.000000e+00 : f32
    %68 = vector.broadcast %cst_23 : f32 to vector<1x128xf32>
    %69 = vector.extract_strided_slice %67 {offsets = [0, 0], sizes = [7, 128], strides = [1, 1]} : vector<8x128xf32> to vector<7x128xf32>
    %70 = tpu.concatenate %68, %69 in 0 : vector<1x128xf32>, vector<7x128xf32> -> vector<8x128xf32>
    %cst_24 = arith.constant 0.000000e+00 : f32
    %71 = vector.shape_cast %20 : vector<8x1xi1> to vector<8x1xi1>
    %72 = vector.broadcast %71 : vector<8x1xi1> to vector<8x128xi1>
    %73 = vector.broadcast %cst_24 : f32 to vector<8x128xf32>
    %74 = arith.select %72, %73, %70 : vector<8x128xi1>, vector<8x128xf32>
    %75 = vector.extract_strided_slice %67 {offsets = [1, 0], sizes = [7, 128], strides = [1, 1]} : vector<8x128xf32> to vector<7x128xf32>
    %76 = tpu.concatenate %75, %68 in 0 : vector<7x128xf32>, vector<1x128xf32> -> vector<8x128xf32>
    %cst_25 = arith.constant 0.000000e+00 : f32
    %77 = vector.shape_cast %22 : vector<8x1xi1> to vector<8x1xi1>
    %78 = vector.broadcast %77 : vector<8x1xi1> to vector<8x128xi1>
    %79 = vector.broadcast %cst_25 : f32 to vector<8x128xf32>
    %80 = arith.select %78, %79, %76 : vector<8x128xi1>, vector<8x128xf32>
    %81 = tpu.concatenate %74, %67, %80 in 1 : vector<8x128xf32>, vector<8x128xf32>, vector<8x128xf32> -> vector<8x384xf32>
    %c0_26 = arith.constant 0 : index
    %c0_27 = arith.constant 0 : index
    %82 = vector.load %arg6[%c0_26, %c0_27] : memref<384x128xf32, #tpu.memory_space<vmem>>, vector<384x128xf32>
    %cst_28 = arith.constant dense<0.000000e+00> : vector<8x128xf32>
    %83 = tpu.matmul %81, %82, %cst_28 {dimension_numbers = #tpu.dot_dimension_numbers<[1], [0], [0], [1], [0, 0, 1, 1], [], []>} : vector<8x384xf32>, vector<384x128xf32>, vector<8x128xf32> -> vector<8x128xf32>
    %c0_29 = arith.constant 0 : index
    %c0_30 = arith.constant 0 : index
    %84 = vector.load %arg7[%c0_29, %c0_30] : memref<1x128xf32, #tpu.memory_space<vmem>>, vector<1x128xf32>
    %85 = vector.broadcast %84 : vector<1x128xf32> to vector<8x128xf32>
    %86 = arith.addf %83, %85 : vector<8x128xf32>
    %cst_31 = arith.constant dense<0.000000e+00> : vector<8xf32>
    %87 = vector.multi_reduction <add>, %86, %cst_31 [1] : vector<8x128xf32> to vector<8xf32>
    %88 = vector.shape_cast %87 : vector<8xf32> to vector<8x1xf32>
    %cst_32 = arith.constant 3.125000e-02 : f32
    %89 = vector.broadcast %cst_32 : f32 to vector<8x1xf32>
    %90 = arith.mulf %88, %89 : vector<8x1xf32>
    %91 = arith.mulf %86, %86 : vector<8x128xf32>
    %cst_33 = arith.constant dense<0.000000e+00> : vector<8xf32>
    %92 = vector.multi_reduction <add>, %91, %cst_33 [1] : vector<8x128xf32> to vector<8xf32>
    %93 = vector.shape_cast %92 : vector<8xf32> to vector<8x1xf32>
    %cst_34 = arith.constant 3.125000e-02 : f32
    %94 = vector.broadcast %cst_34 : f32 to vector<8x1xf32>
    %95 = arith.mulf %93, %94 : vector<8x1xf32>
    %96 = arith.mulf %90, %90 : vector<8x1xf32>
    %97 = arith.subf %95, %96 : vector<8x1xf32>
    %98 = vector.broadcast %90 : vector<8x1xf32> to vector<8x128xf32>
    %99 = arith.subf %86, %98 : vector<8x128xf32>
    %cst_35 = arith.constant 9.99999974E-6 : f32
    %100 = vector.broadcast %cst_35 : f32 to vector<8x1xf32>
    %101 = arith.addf %97, %100 : vector<8x1xf32>
    %102 = math.rsqrt %101 : vector<8x1xf32>
    %103 = vector.broadcast %102 : vector<8x1xf32> to vector<8x128xf32>
    %104 = arith.mulf %99, %103 : vector<8x128xf32>
    %c0_36 = arith.constant 0 : index
    %c0_37 = arith.constant 0 : index
    %105 = vector.load %arg8[%c0_36, %c0_37] : memref<1x128xf32, #tpu.memory_space<vmem>>, vector<1x128xf32>
    %106 = vector.broadcast %105 : vector<1x128xf32> to vector<8x128xf32>
    %107 = arith.mulf %104, %106 : vector<8x128xf32>
    %c0_38 = arith.constant 0 : index
    %c0_39 = arith.constant 0 : index
    %108 = vector.load %arg9[%c0_38, %c0_39] : memref<1x128xf32, #tpu.memory_space<vmem>>, vector<1x128xf32>
    %109 = vector.broadcast %108 : vector<1x128xf32> to vector<8x128xf32>
    %110 = arith.addf %107, %109 : vector<8x128xf32>
    %cst_40 = arith.constant 0.000000e+00 : f32
    %111 = vector.broadcast %cst_40 : f32 to vector<8x128xf32>
    %112 = arith.maximumf %110, %111 : vector<8x128xf32>
    %113 = vector.shape_cast %112 : vector<8x128xf32> to vector<1x8x128xf32>
    %c0_41 = arith.constant 0 : index
    %c0_42 = arith.constant 0 : index
    %114 = vector.load %arg10[%c0_41, %c0_42] : memref<1x128xf32, #tpu.memory_space<vmem>>, vector<1x128xf32>
    %115 = vector.shape_cast %114 : vector<1x128xf32> to vector<1x1x128xf32>
    %116 = vector.broadcast %115 : vector<1x1x128xf32> to vector<1x8x128xf32>
    %117 = arith.mulf %113, %116 : vector<1x8x128xf32>
    %cst_43 = arith.constant dense<0.000000e+00> : vector<1x8xf32>
    %118 = vector.multi_reduction <add>, %117, %cst_43 [2] : vector<1x8x128xf32> to vector<1x8xf32>
    %c0_44 = arith.constant 0 : index
    %c0_45 = arith.constant 0 : index
    %119 = vector.load %arg11[%c0_44, %c0_45] : memref<1x1xf32, #tpu.memory_space<vmem>>, vector<1x1xf32>
    %120 = vector.broadcast %119 : vector<1x1xf32> to vector<1x8xf32>
    %121 = arith.addf %118, %120 : vector<1x8xf32>
    %cst_46 = arith.constant 0.000000e+00 : f32
    %122 = vector.broadcast %cst_46 : f32 to vector<1x8xf32>
    %123 = arith.maximumf %121, %122 : vector<1x8xf32>
    %124 = vector.shape_cast %123 : vector<1x8xf32> to vector<1x1x8xf32>
    %c0_47 = arith.constant 0 : index
    %c0_48 = arith.constant 0 : index
    %c0_49 = arith.constant 0 : index
    %125 = vector.load %arg12[%c0_47, %c0_48, %c0_49] : memref<1x1x8xf32, #tpu.memory_space<vmem>>, vector<1x1x8xf32>
    tpu.vector_store %arg12[%c0_47, %c0_48, %c0_49], %124 {strides = array<i32>} : memref<1x1x8xf32, #tpu.memory_space<vmem>>, vector<1x1x8xf32>,
    return
  }
  func.func @transform_0(%arg0: i32) -> (i32, i32, i32) {
    %c0_i32 = arith.constant 0 : i32
    %c0_i32_0 = arith.constant 0 : i32
    %c0_i32_1 = arith.constant 0 : i32
    return %arg0, %c0_i32, %c0_i32_0 : i32, i32, i32
  }
  func.func @transform_1(%arg0: i32) -> (i32, i32) {
    %c0_i32 = arith.constant 0 : i32
    %c0_i32_0 = arith.constant 0 : i32
    %c0_i32_1 = arith.constant 0 : i32
    return %c0_i32, %c0_i32_0 : i32, i32
  }
  func.func @transform_2(%arg0: i32) -> (i32, i32) {
    %c0_i32 = arith.constant 0 : i32
    %c0_i32_0 = arith.constant 0 : i32
    %c0_i32_1 = arith.constant 0 : i32
    return %c0_i32, %c0_i32_0 : i32, i32
  }
  func.func @transform_3(%arg0: i32) -> (i32, i32) {
    %c0_i32 = arith.constant 0 : i32
    %c0_i32_0 = arith.constant 0 : i32
    %c0_i32_1 = arith.constant 0 : i32
    return %c0_i32, %c0_i32_0 : i32, i32
  }
  func.func @transform_4(%arg0: i32) -> (i32, i32) {
    %c0_i32 = arith.constant 0 : i32
    %c0_i32_0 = arith.constant 0 : i32
    %c0_i32_1 = arith.constant 0 : i32
    return %c0_i32, %c0_i32_0 : i32, i32
  }
  func.func @transform_5(%arg0: i32) -> (i32, i32) {
    %c0_i32 = arith.constant 0 : i32
    %c0_i32_0 = arith.constant 0 : i32
    %c0_i32_1 = arith.constant 0 : i32
    return %c0_i32, %c0_i32_0 : i32, i32
  }
  func.func @transform_6(%arg0: i32) -> (i32, i32) {
    %c0_i32 = arith.constant 0 : i32
    %c0_i32_0 = arith.constant 0 : i32
    %c0_i32_1 = arith.constant 0 : i32
    return %c0_i32, %c0_i32_0 : i32, i32
  }
  func.func @transform_7(%arg0: i32) -> (i32, i32) {
    %c0_i32 = arith.constant 0 : i32
    %c0_i32_0 = arith.constant 0 : i32
    %c0_i32_1 = arith.constant 0 : i32
    return %c0_i32, %c0_i32_0 : i32, i32
  }
  func.func @transform_8(%arg0: i32) -> (i32, i32) {
    %c0_i32 = arith.constant 0 : i32
    %c0_i32_0 = arith.constant 0 : i32
    %c0_i32_1 = arith.constant 0 : i32
    return %c0_i32, %c0_i32_0 : i32, i32
  }
  func.func @transform_9(%arg0: i32) -> (i32, i32) {
    %c0_i32 = arith.constant 0 : i32
    %c0_i32_0 = arith.constant 0 : i32
    %c0_i32_1 = arith.constant 0 : i32
    return %c0_i32, %c0_i32_0 : i32, i32
  }
  func.func @transform_10(%arg0: i32) -> (i32, i32) {
    %c0_i32 = arith.constant 0 : i32
    %c0_i32_0 = arith.constant 0 : i32
    %c0_i32_1 = arith.constant 0 : i32
    return %c0_i32, %c0_i32_0 : i32, i32
  }
  func.func @transform_11(%arg0: i32) -> (i32, i32, i32) {
    %c0_i32 = arith.constant 0 : i32
    %c0_i32_0 = arith.constant 0 : i32
    %c0_i32_1 = arith.constant 0 : i32
    return %arg0, %c0_i32, %c0_i32_0 : i32, i32, i32
  }
}

</mosaic_0001>

<llo_original>
// kernel: tpu_custom_call.1
$region0: #{tpu_custom_call.1}
  #allocation0 [shape = 'u32[]', space=smem, size = 0x4, offset = 0x4, fixed_abs, tag = 'smem constant byte address 0x4 - core index']
  #allocation1 [shape = 'u32[144,128]{1,0:T(1,128)}', space=vmem, size = 0x12000, scoped, tag = 'internal scratch']
  #allocation2 [shape = 'f32[1,1]{1,0:T(1,128)S(1)}', space=vmem, size = 0x200, scoped, tag = 'scoped memory for tpu_custom_call.1']
  %s0 = inlined_call_operand.hbm [shape: f32[2,8,128], index: 0, kind: input, shape index: {}]
  %s1 = inlined_call_operand.hbm [shape: f32[384,128], index: 1, kind: input, shape index: {}]
  %s2 = inlined_call_operand.vmem [shape: f32[1,128], index: 2, kind: input, shape index: {}]
  %s3 = inlined_call_operand.vmem [shape: f32[1,128], index: 3, kind: input, shape index: {}]
  %s4 = inlined_call_operand.vmem [shape: f32[1,128], index: 4, kind: input, shape index: {}]
  %s5 = inlined_call_operand.hbm [shape: f32[384,128], index: 5, kind: input, shape index: {}]
  %s6 = inlined_call_operand.vmem [shape: f32[1,128], index: 6, kind: input, shape index: {}]
  %s7 = inlined_call_operand.vmem [shape: f32[1,128], index: 7, kind: input, shape index: {}]
  %s8 = inlined_call_operand.vmem [shape: f32[1,128], index: 8, kind: input, shape index: {}]
  %s9 = inlined_call_operand.vmem [shape: f32[1,128], index: 9, kind: input, shape index: {}]
  %s10 = inlined_call_operand.<no memory space> [shape: f32[1,1], index: 10, kind: input, shape index: {}]
  %s11 = inlined_call_operand.hbm [shape: f32[2,1,8], index: 11, kind: output, shape index: {}]
  %s12 = sld [smem:[#allocation0]]
  $region89: #{tpu_custom_call.1} parent=0
    _
  %s14 = ssub.s32 1, %s12
  %s15 = scalar_select 0, %s14, %s12
  %v16 = vstv %s10
  %17 = vst [vmem:[#allocation2] sm:$0x1] %v16
  $region1: #{tpu_custom_call.1} parent=0
    #allocation3 [shape = 'u8[8192]{0}', space=vmem, size = 0x2000, scoped, tag = 'input window, operand 0']
    #allocation4 [shape = 's32[2]{0}', space=sflag, size = 0x8, scoped, tag = 'scoped memory for tpu_custom_call.1']
    #allocation5 [shape = 's32[2]{0}', space=sflag, size = 0x8, scoped, tag = 'scoped memory for tpu_custom_call.1']
    #allocation6 [shape = 'u8[196608]{0}', space=vmem, size = 0x30000, scoped, tag = 'input window, operand 1, single buffered']
    #allocation7 [shape = 's32[1]{0}', space=sflag, size = 0x4, scoped, tag = 'scoped memory for tpu_custom_call.1']
    #allocation8 [shape = 'u8[196608]{0}', space=vmem, size = 0x30000, scoped, tag = 'input window, operand 5, single buffered']
    #allocation9 [shape = 'u8[1024]{0}', space=vmem, size = 0x400, scoped, tag = 'output window, operand 0']
    %18 = vsyncpa [#allocation4], 0
    %s19 = scalar_lea.sflag [#allocation4], 1
    %20 = vsyncpa %s19, 0
    %21 = vsyncpa [#allocation7], 0
    %22 = vsyncpa [#allocation5], 0
    %s23 = scalar_lea.sflag [#allocation5], 1
    %24 = vsyncpa %s23, 0
    loop: start=0, step=1, limit=4
    $region2: #{tpu_custom_call.1} parent=1 // loop_pre_header
      _
    $region3: #{tpu_custom_call.1} parent=1 // loop_header
      %s26 = sphi 0, %s30
      %p27 = scmp.ge.s32.totalorder %s26, 4
      %s36 = sphi 0, %s38
      %s39 = sphi 0, %s36
      %s40 = sphi 0, %s39
      %s56 = sphi 0, %s40
      %s60 = sphi 0, %s60
      %s62 = sphi 0, %s60
      %s63 = sphi 0, %s62
      %s77 = sphi 0, %s63
      %s81 = sphi 0, %s81
      %s83 = sphi 0, %s81
      %s84 = sphi 0, %s83
      %s98 = sphi 0, %s84
      %s102 = sphi 0, %s102
      %s104 = sphi 0, %s102
      %s105 = sphi 0, %s104
      %s119 = sphi 0, %s105
      %s123 = sphi 0, %s123
      %s125 = sphi 0, %s123
      %s126 = sphi 0, %s125
      %s140 = sphi 0, %s126
      %s144 = sphi 0, %s144
      %s146 = sphi 0, %s144
      %s147 = sphi 0, %s146
      %s161 = sphi 0, %s147
      %s165 = sphi 0, %s165
      %s167 = sphi 0, %s165
      %s168 = sphi 0, %s167
      %s182 = sphi 0, %s168
      %s186 = sphi 0, %s186
      %s188 = sphi 0, %s186
      %s189 = sphi 0, %s188
      %s203 = sphi 0, %s189
      %s207 = sphi 0, %s207
      %s209 = sphi 0, %s207
      %s210 = sphi 0, %s209
      %s224 = sphi 0, %s210
      %s228 = sphi 0, %s228
      %s230 = sphi 0, %s228
      %s231 = sphi 0, %s230
      %s245 = sphi 0, %s231
      %s249 = sphi 0, %s249
      %s251 = sphi 0, %s249
      %s252 = sphi 0, %s251
      %s266 = sphi 0, %s252
      %s272 = sphi 0, %s274
      %s275 = sphi 0, %s272
      %s276 = sphi 0, %s275
      %s292 = sphi 0, %s276
    $region4: #{tpu_custom_call.1} parent=1 // loop_header_branch
      %29 = sbr.rel (%p27) target = $region8
    $region5: #{tpu_custom_call.1} parent=1 // loop_body
      %s31 = ssub.s32 %s26, 1
      %s32 = ssub.s32 %s26, 2
      %s33 = sadd.s32 %s26, 1
      %s34 = ssub.s32 %s26, %s33
      %p35 = scmp.eq.s32.totalorder %s34, 0
      %s37 = sadd.s32 %s36, 1
      %s38 = scalar_select %p35, %s36, %s37
      %p41 = pneg %p35
      %p42 = scmp.eq.s32.totalorder %s26, 1
      %p43 = por %p41, %p42
      %p44 = scmp.ne.s32.totalorder %s36, %s39
      %p45 = scmp.eq.s32.totalorder %s26, 0
      %p46 = por %p44, %p45
      %p47 = scmp.ne.s32.totalorder %s36, %s39
      %p48 = scmp.eq.s32.totalorder %s31, 1
      %p49 = por %p47, %p48
      %p50 = scmp.ne.s32.totalorder %s39, %s40
      %p51 = scmp.eq.s32.totalorder %s31, 0
      %p52 = por %p50, %p51
      %p53 = scmp.ne.s32.totalorder %s39, %s40
      %p54 = scmp.eq.s32.totalorder %s32, 1
      %p55 = por %p53, %p54
      %p57 = scmp.ne.s32.totalorder %s40, %s56
      %p58 = scmp.eq.s32.totalorder %s32, 0
      %p59 = por %p57, %p58
      %s61 = sadd.s32 %s60, 1
      %p64 = scmp.eq.s32.totalorder %s26, 1
      %p65 = scmp.ne.s32.totalorder %s60, %s62
      %p66 = scmp.eq.s32.totalorder %s26, 0
      %p67 = por %p65, %p66
      %p68 = scmp.ne.s32.totalorder %s60, %s62
      %p69 = scmp.eq.s32.totalorder %s31, 1
      %p70 = por %p68, %p69
      %p71 = scmp.ne.s32.totalorder %s62, %s63
      %p72 = scmp.eq.s32.totalorder %s31, 0
      %p73 = por %p71, %p72
      %p74 = scmp.ne.s32.totalorder %s62, %s63
      %p75 = scmp.eq.s32.totalorder %s32, 1
      %p76 = por %p74, %p75
      %p78 = scmp.ne.s32.totalorder %s63, %s77
      %p79 = scmp.eq.s32.totalorder %s32, 0
      %p80 = por %p78, %p79
      %s82 = sadd.s32 %s81, 1
      %p85 = scmp.eq.s32.totalorder %s26, 1
      %p86 = scmp.ne.s32.totalorder %s81, %s83
      %p87 = scmp.eq.s32.totalorder %s26, 0
      %p88 = por %p86, %p87
      %p89 = scmp.ne.s32.totalorder %s81, %s83
      %p90 = scmp.eq.s32.totalorder %s31, 1
      %p91 = por %p89, %p90
      %p92 = scmp.ne.s32.totalorder %s83, %s84
      %p93 = scmp.eq.s32.totalorder %s31, 0
      %p94 = por %p92, %p93
      %p95 = scmp.ne.s32.totalorder %s83, %s84
      %p96 = scmp.eq.s32.totalorder %s32, 1
      %p97 = por %p95, %p96
      %p99 = scmp.ne.s32.totalorder %s84, %s98
      %p100 = scmp.eq.s32.totalorder %s32, 0
      %p101 = por %p99, %p100
      %s103 = sadd.s32 %s102, 1
      %p106 = scmp.eq.s32.totalorder %s26, 1
      %p107 = scmp.ne.s32.totalorder %s102, %s104
      %p108 = scmp.eq.s32.totalorder %s26, 0
      %p109 = por %p107, %p108
      %p110 = scmp.ne.s32.totalorder %s102, %s104
      %p111 = scmp.eq.s32.totalorder %s31, 1
      %p112 = por %p110, %p111
      %p113 = scmp.ne.s32.totalorder %s104, %s105
      %p114 = scmp.eq.s32.totalorder %s31, 0
      %p115 = por %p113, %p114
      %p116 = scmp.ne.s32.totalorder %s104, %s105
      %p117 = scmp.eq.s32.totalorder %s32, 1
      %p118 = por %p116, %p117
      %p120 = scmp.ne.s32.totalorder %s105, %s119
      %p121 = scmp.eq.s32.totalorder %s32, 0
      %p122 = por %p120, %p121
      %s124 = sadd.s32 %s123, 1
      %p127 = scmp.eq.s32.totalorder %s26, 1
      %p128 = scmp.ne.s32.totalorder %s123, %s125
      %p129 = scmp.eq.s32.totalorder %s26, 0
      %p130 = por %p128, %p129
      %p131 = scmp.ne.s32.totalorder %s123, %s125
      %p132 = scmp.eq.s32.totalorder %s31, 1
      %p133 = por %p131, %p132
      %p134 = scmp.ne.s32.totalorder %s125, %s126
      %p135 = scmp.eq.s32.totalorder %s31, 0
      %p136 = por %p134, %p135
      %p137 = scmp.ne.s32.totalorder %s125, %s126
      %p138 = scmp.eq.s32.totalorder %s32, 1
      %p139 = por %p137, %p138
      %p141 = scmp.ne.s32.totalorder %s126, %s140
      %p142 = scmp.eq.s32.totalorder %s32, 0
      %p143 = por %p141, %p142
      %s145 = sadd.s32 %s144, 1
      %p148 = scmp.eq.s32.totalorder %s26, 1
      %p149 = scmp.ne.s32.totalorder %s144, %s146
      %p150 = scmp.eq.s32.totalorder %s26, 0
      %p151 = por %p149, %p150
      %p152 = scmp.ne.s32.totalorder %s144, %s146
      %p153 = scmp.eq.s32.totalorder %s31, 1
      %p154 = por %p152, %p153
      %p155 = scmp.ne.s32.totalorder %s146, %s147
      %p156 = scmp.eq.s32.totalorder %s31, 0
      %p157 = por %p155, %p156
      %p158 = scmp.ne.s32.totalorder %s146, %s147
      %p159 = scmp.eq.s32.totalorder %s32, 1
      %p160 = por %p158, %p159
      %p162 = scmp.ne.s32.totalorder %s147, %s161
      %p163 = scmp.eq.s32.totalorder %s32, 0
      %p164 = por %p162, %p163
      %s166 = sadd.s32 %s165, 1
      %p169 = scmp.eq.s32.totalorder %s26, 1
      %p170 = scmp.ne.s32.totalorder %s165, %s167
      %p171 = scmp.eq.s32.totalorder %s26, 0
      %p172 = por %p170, %p171
      %p173 = scmp.ne.s32.totalorder %s165, %s167
      %p174 = scmp.eq.s32.totalorder %s31, 1
      %p175 = por %p173, %p174
      %p176 = scmp.ne.s32.totalorder %s167, %s168
      %p177 = scmp.eq.s32.totalorder %s31, 0
      %p178 = por %p176, %p177
      %p179 = scmp.ne.s32.totalorder %s167, %s168
      %p180 = scmp.eq.s32.totalorder %s32, 1
      %p181 = por %p179, %p180
      %p183 = scmp.ne.s32.totalorder %s168, %s182
      %p184 = scmp.eq.s32.totalorder %s32, 0
      %p185 = por %p183, %p184
      %s187 = sadd.s32 %s186, 1
      %p190 = scmp.eq.s32.totalorder %s26, 1
      %p191 = scmp.ne.s32.totalorder %s186, %s188
      %p192 = scmp.eq.s32.totalorder %s26, 0
      %p193 = por %p191, %p192
      %p194 = scmp.ne.s32.totalorder %s186, %s188
      %p195 = scmp.eq.s32.totalorder %s31, 1
      %p196 = por %p194, %p195
      %p197 = scmp.ne.s32.totalorder %s188, %s189
      %p198 = scmp.eq.s32.totalorder %s31, 0
      %p199 = por %p197, %p198
      %p200 = scmp.ne.s32.totalorder %s188, %s189
      %p201 = scmp.eq.s32.totalorder %s32, 1
      %p202 = por %p200, %p201
      %p204 = scmp.ne.s32.totalorder %s189, %s203
      %p205 = scmp.eq.s32.totalorder %s32, 0
      %p206 = por %p204, %p205
      %s208 = sadd.s32 %s207, 1
      %p211 = scmp.eq.s32.totalorder %s26, 1
      %p212 = scmp.ne.s32.totalorder %s207, %s209
      %p213 = scmp.eq.s32.totalorder %s26, 0
      %p214 = por %p212, %p213
      %p215 = scmp.ne.s32.totalorder %s207, %s209
      %p216 = scmp.eq.s32.totalorder %s31, 1
      %p217 = por %p215, %p216
      %p218 = scmp.ne.s32.totalorder %s209, %s210
      %p219 = scmp.eq.s32.totalorder %s31, 0
      %p220 = por %p218, %p219
      %p221 = scmp.ne.s32.totalorder %s209, %s210
      %p222 = scmp.eq.s32.totalorder %s32, 1
      %p223 = por %p221, %p222
      %p225 = scmp.ne.s32.totalorder %s210, %s224
      %p226 = scmp.eq.s32.totalorder %s32, 0
      %p227 = por %p225, %p226
      %s229 = sadd.s32 %s228, 1
      %p232 = scmp.eq.s32.totalorder %s26, 1
      %p233 = scmp.ne.s32.totalorder %s228, %s230
      %p234 = scmp.eq.s32.totalorder %s26, 0
      %p235 = por %p233, %p234
      %p236 = scmp.ne.s32.totalorder %s228, %s230
      %p237 = scmp.eq.s32.totalorder %s31, 1
      %p238 = por %p236, %p237
      %p239 = scmp.ne.s32.totalorder %s230, %s231
      %p240 = scmp.eq.s32.totalorder %s31, 0
      %p241 = por %p239, %p240
      %p242 = scmp.ne.s32.totalorder %s230, %s231
      %p243 = scmp.eq.s32.totalorder %s32, 1
      %p244 = por %p242, %p243
      %p246 = scmp.ne.s32.totalorder %s231, %s245
      %p247 = scmp.eq.s32.totalorder %s32, 0
      %p248 = por %p246, %p247
      %s250 = sadd.s32 %s249, 1
      %p253 = scmp.eq.s32.totalorder %s26, 1
      %p254 = scmp.ne.s32.totalorder %s249, %s251
      %p255 = scmp.eq.s32.totalorder %s26, 0
      %p256 = por %p254, %p255
      %p257 = scmp.ne.s32.totalorder %s249, %s251
      %p258 = scmp.eq.s32.totalorder %s31, 1
      %p259 = por %p257, %p258
      %p260 = scmp.ne.s32.totalorder %s251, %s252
      %p261 = scmp.eq.s32.totalorder %s31, 0
      %p262 = por %p260, %p261
      %p263 = scmp.ne.s32.totalorder %s251, %s252
      %p264 = scmp.eq.s32.totalorder %s32, 1
      %p265 = por %p263, %p264
      %p267 = scmp.ne.s32.totalorder %s252, %s266
      %p268 = scmp.eq.s32.totalorder %s32, 0
      %p269 = por %p267, %p268
      %s270 = ssub.s32 %s26, %s33
      %p271 = scmp.eq.s32.totalorder %s270, 0
      %s273 = sadd.s32 %s272, 1
      %s274 = scalar_select %p271, %s272, %s273
      %p277 = pneg %p271
      %p278 = scmp.eq.s32.totalorder %s26, 1
      %p279 = por %p277, %p278
      %p280 = scmp.ne.s32.totalorder %s272, %s275
      %p281 = scmp.eq.s32.totalorder %s26, 0
      %p282 = por %p280, %p281
      %p283 = scmp.ne.s32.totalorder %s272, %s275
      %p284 = scmp.eq.s32.totalorder %s31, 1
      %p285 = por %p283, %p284
      %p286 = scmp.ne.s32.totalorder %s275, %s276
      %p287 = scmp.eq.s32.totalorder %s31, 0
      %p288 = por %p286, %p287
      %p289 = scmp.ne.s32.totalorder %s275, %s276
      %p290 = scmp.eq.s32.totalorder %s32, 1
      %p291 = por %p289, %p290
      %p293 = scmp.ne.s32.totalorder %s276, %s292
      %p294 = scmp.eq.s32.totalorder %s32, 0
      %p295 = por %p293, %p294
      %p296 = scmp.le.s32.totalorder 1, %s26
      %p297 = scmp.lt.s32.totalorder %s26, 3
      %p298 = pnand %p296, %p297
      %p299 = pneg %p298
      // Predicated region
      $region9: #{tpu_custom_call.1} parent=5 // pred_check
        _
      $region10: #{tpu_custom_call.1} parent=5 // pred_check_branch
        %301 = sbr.rel (%p298) target = $region12
      $region11: #{tpu_custom_call.1} parent=5 // pred_region
        %s302 = ssub.s32 %s26, 1
        // Predicated region
        $region13: #{tpu_custom_call.1} parent=11 // pred_check
          %p303 = pneg %p73
        $region14: #{tpu_custom_call.1} parent=11 // pred_check_branch
          %305 = sbr.rel (%p303) target = $region16
        $region15: #{tpu_custom_call.1} parent=11 // pred_region
          %s307 = ssub.s32 6144, 6144
          %308 = vsyncadd [#allocation7], %s307
          %s309 = sshll.u32 [#allocation6], 4
          %s310 = int_to_ptr.vmem [resolvable:$true] %s309
          %315 = dma.hbm_to_vmem [thread:$0]  %s1, 6144, %s310, [#allocation7], 128, 128, 8
        $region16: #{tpu_custom_call.1} parent=11 // pred_fallthru
          _
        // Predicated region
        $region17: #{tpu_custom_call.1} parent=11 // pred_check
          %p316 = pneg %p94
        $region18: #{tpu_custom_call.1} parent=11 // pred_check_branch
          %318 = sbr.rel (%p316) target = $region20
        $region19: #{tpu_custom_call.1} parent=11 // pred_region
          _
        $region20: #{tpu_custom_call.1} parent=11 // pred_fallthru
          _
        // Predicated region
        $region21: #{tpu_custom_call.1} parent=11 // pred_check
          %p319 = pneg %p115
        $region22: #{tpu_custom_call.1} parent=11 // pred_check_branch
          %321 = sbr.rel (%p319) target = $region24
        $region23: #{tpu_custom_call.1} parent=11 // pred_region
          _
        $region24: #{tpu_custom_call.1} parent=11 // pred_fallthru
          _
        // Predicated region
        $region25: #{tpu_custom_call.1} parent=11 // pred_check
          %p322 = pneg %p136
        $region26: #{tpu_custom_call.1} parent=11 // pred_check_branch
          %324 = sbr.rel (%p322) target = $region28
        $region27: #{tpu_custom_call.1} parent=11 // pred_region
          _
        $region28: #{tpu_custom_call.1} parent=11 // pred_fallthru
          _
        // Predicated region
        $region29: #{tpu_custom_call.1} parent=11 // pred_check
          %p325 = pneg %p157
        $region30: #{tpu_custom_call.1} parent=11 // pred_check_branch
          %327 = sbr.rel (%p325) target = $region32
        $region31: #{tpu_custom_call.1} parent=11 // pred_region
          %s329 = ssub.s32 6144, 6144
          %330 = vsyncadd [#allocation7], %s329
          %s331 = sshll.u32 [#allocation8], 4
          %s332 = int_to_ptr.vmem [resolvable:$true] %s331
          %337 = dma.hbm_to_vmem [thread:$0]  %s5, 6144, %s332, [#allocation7], 128, 128, 8
        $region32: #{tpu_custom_call.1} parent=11 // pred_fallthru
          _
        // Predicated region
        $region33: #{tpu_custom_call.1} parent=11 // pred_check
          %p338 = pneg %p178
        $region34: #{tpu_custom_call.1} parent=11 // pred_check_branch
          %340 = sbr.rel (%p338) target = $region36
        $region35: #{tpu_custom_call.1} parent=11 // pred_region
          _
        $region36: #{tpu_custom_call.1} parent=11 // pred_fallthru
          _
        // Predicated region
        $region37: #{tpu_custom_call.1} parent=11 // pred_check
          %p341 = pneg %p199
        $region38: #{tpu_custom_call.1} parent=11 // pred_check_branch
          %343 = sbr.rel (%p341) target = $region40
        $region39: #{tpu_custom_call.1} parent=11 // pred_region
          _
        $region40: #{tpu_custom_call.1} parent=11 // pred_fallthru
          _
        // Predicated region
        $region41: #{tpu_custom_call.1} parent=11 // pred_check
          %p344 = pneg %p220
        $region42: #{tpu_custom_call.1} parent=11 // pred_check_branch
          %346 = sbr.rel (%p344) target = $region44
        $region43: #{tpu_custom_call.1} parent=11 // pred_region
          _
        $region44: #{tpu_custom_call.1} parent=11 // pred_fallthru
          _
        // Predicated region
        $region45: #{tpu_custom_call.1} parent=11 // pred_check
          %p347 = pneg %p241
        $region46: #{tpu_custom_call.1} parent=11 // pred_check_branch
          %349 = sbr.rel (%p347) target = $region48
        $region47: #{tpu_custom_call.1} parent=11 // pred_region
          _
        $region48: #{tpu_custom_call.1} parent=11 // pred_fallthru
          _
        // Predicated region
        $region49: #{tpu_custom_call.1} parent=11 // pred_check
          %p350 = pneg %p262
        $region50: #{tpu_custom_call.1} parent=11 // pred_check_branch
          %352 = sbr.rel (%p350) target = $region52
        $region51: #{tpu_custom_call.1} parent=11 // pred_region
          _
        $region52: #{tpu_custom_call.1} parent=11 // pred_fallthru
          _
      $region12: #{tpu_custom_call.1} parent=5 // pred_fallthru
        _
      %p353 = scmp.lt.s32.totalorder %s26, 2
      // Predicated region
      $region53: #{tpu_custom_call.1} parent=5 // pred_check
        %p354 = pneg %p353
      $region54: #{tpu_custom_call.1} parent=5 // pred_check_branch
        %356 = sbr.rel (%p354) target = $region56
      $region55: #{tpu_custom_call.1} parent=5 // pred_region
        // Predicated region
        $region57: #{tpu_custom_call.1} parent=55 // pred_check
          %p357 = pneg %p46
        $region58: #{tpu_custom_call.1} parent=55 // pred_check_branch
          %359 = sbr.rel (%p357) target = $region60
        $region59: #{tpu_custom_call.1} parent=55 // pred_region
          %s360 = sand.u32 %s36, 1
          %s361 = scalar_lea.sflag [#allocation4], %s360
          %s362 = sand.u32 %s36, 1
          %s363 = smul.addr %s362, 8
          %s364 = scalar_lea.vmem [#allocation3], %s363
          %s366 = ssub.s32 128, 128
          %367 = vsyncadd %s361, %s366
          %s368 = smul.addr %s26, 128
          %s369 = scalar_lea.hbm %s0, %s368
          %s371 = sshll.u32 %s364, 4
          %s372 = int_to_ptr.vmem [resolvable:$true] %s371
          %374 = dma.hbm_to_vmem [thread:$0]  %s369, 128, %s372, %s361
        $region60: #{tpu_custom_call.1} parent=55 // pred_fallthru
          _
      $region56: #{tpu_custom_call.1} parent=5 // pred_fallthru
        _
      %p375 = scmp.le.s32.totalorder 1, %s26
      %p376 = scmp.lt.s32.totalorder %s26, 3
      %p377 = pnand %p375, %p376
      %p378 = pneg %p377
      // Predicated region
      $region61: #{tpu_custom_call.1} parent=5 // pred_check
        _
      $region62: #{tpu_custom_call.1} parent=5 // pred_check_branch
        %380 = sbr.rel (%p377) target = $region64
      $region63: #{tpu_custom_call.1} parent=5 // pred_region
        %s381 = ssub.s32 %s26, 1
        %s382 = sand.u32 %s39, 1
        %s383 = scalar_lea.sflag [#allocation4], %s382
        %s384 = sand.u32 %s39, 1
        %s385 = smul.addr %s384, 8
        %s386 = scalar_lea.vmem [#allocation3], %s385
        // Predicated region
        $region65: #{tpu_custom_call.1} parent=63 // pred_check
          %p387 = pneg %p52
        $region66: #{tpu_custom_call.1} parent=63 // pred_check_branch
          %389 = sbr.rel (%p387) target = $region68
        $region67: #{tpu_custom_call.1} parent=63 // pred_region
          %390 = dma.done %s383, 128
        $region68: #{tpu_custom_call.1} parent=63 // pred_fallthru
          _
        // Predicated region
        $region69: #{tpu_custom_call.1} parent=63 // pred_check
          %p391 = pneg %p73
        $region70: #{tpu_custom_call.1} parent=63 // pred_check_branch
          %393 = sbr.rel (%p391) target = $region72
        $region71: #{tpu_custom_call.1} parent=63 // pred_region
          %394 = dma.done [#allocation7], 6144
        $region72: #{tpu_custom_call.1} parent=63 // pred_fallthru
          _
        // Predicated region
        $region73: #{tpu_custom_call.1} parent=63 // pred_check
          %p395 = pneg %p157
        $region74: #{tpu_custom_call.1} parent=63 // pred_check_branch
          %397 = sbr.rel (%p395) target = $region76
        $region75: #{tpu_custom_call.1} parent=63 // pred_region
          %398 = dma.done [#allocation7], 6144
        $region76: #{tpu_custom_call.1} parent=63 // pred_fallthru
          _
        %s399 = sand.u32 %s39, 1
        %s400 = scalar_lea.sflag [#allocation4], %s399
        %s401 = sand.u32 %s39, 1
        %s402 = smul.addr %s401, 8
        %s403 = scalar_lea.vmem [#allocation3], %s402
        %p404 = pneg %p52
        %p405 = pneg %p49
        %p406 = pneg %p73
        %p407 = pneg %p70
        %p408 = pneg %p94
        %p409 = pneg %p91
        %p410 = pneg %p115
        %p411 = pneg %p112
        %p412 = pneg %p136
        %p413 = pneg %p133
        %p414 = pneg %p157
        %p415 = pneg %p154
        %p416 = pneg %p178
        %p417 = pneg %p175
        %p418 = pneg %p199
        %p419 = pneg %p196
        %p420 = pneg %p220
        %p421 = pneg %p217
        %p422 = pneg %p241
        %p423 = pneg %p238
        %p424 = pneg %p262
        %p425 = pneg %p259
        %p426 = pneg %p288
        %p427 = pneg %p285
        %s428 = sand.u32 %s275, 1
        %s429 = scalar_lea.sflag [#allocation5], %s428
        %s430 = sand.u32 %s275, 1
        %s431 = scalar_lea.vmem [#allocation9], %s430
        %v432 = vld [vmem:[%s386] sm:$0xff]
        %v433 = vlaneseq
        %v434 = vshrl.u32 %v433, 7
        %vm435 = vcmp.lt.s32.totalorder %v434, 0
        %v436 = vsub.s32 0, %v434
        %v437 = vsel %vm435, %v436, %v434
        %v438 = vshrl.u32 %v437, 3
        %v439 = vand.u32 %v437, 7
        %v440 = vsub.s32 0, %v439
        %v441 = vsel %vm435, %v440, %v439
        %vm442 = vcmp.ne.s32.totalorder %v441, 0
        %vm443 = vcmp.lt.s32.totalorder %v441, 0
        %vm444 = vmand %vm443, %vm442
        %v445 = vadd.s32 %v441, 8
        %v446 = vsel %vm444, %v445, %v441
        %vm447 = vcmp.eq.s32.totalorder %v446, 0
        %vm448 = vcmp.eq.s32.totalorder %v446, 7
        %v450 = vrot.slane %v432, 7
        %vm452 = vcmask 1040384
        %v453 = vsel %vm452, 0.0, %v450
        %v454 = vsel %vm447, 1, 0
        %vm455 = vcmp.eq.s32.totalorder %v454, 1
        %v456 = vsel %vm455, 0.0, %v453
        %v457 = vrot.slane %v432, 1
        %vm459 = vcmask 1046528
        %v460 = vsel %vm459, %v457, 0.0
        %v461 = vsel %vm448, 1, 0
        %vm462 = vcmp.eq.s32.totalorder %v461, 1
        %v463 = vsel %vm462, 0.0, %v460
        %v464 = vld [vmem:[#allocation6] sm:$0xff]
        %v465 = vld [vmem:[#allocation6 + $0x8] sm:$0xff]
        %v466 = vld [vmem:[#allocation6 + $0x10] sm:$0xff]
        %v467 = vld [vmem:[#allocation6 + $0x18] sm:$0xff]
        %v468 = vld [vmem:[#allocation6 + $0x20] sm:$0xff]
        %v469 = vld [vmem:[#allocation6 + $0x28] sm:$0xff]
        %v470 = vld [vmem:[#allocation6 + $0x30] sm:$0xff]
        %v471 = vld [vmem:[#allocation6 + $0x38] sm:$0xff]
        %v472 = vld [vmem:[#allocation6 + $0x40] sm:$0xff]
        %v473 = vld [vmem:[#allocation6 + $0x48] sm:$0xff]
        %v474 = vld [vmem:[#allocation6 + $0x50] sm:$0xff]
        %v475 = vld [vmem:[#allocation6 + $0x58] sm:$0xff]
        %v476 = vld [vmem:[#allocation6 + $0x60] sm:$0xff]
        %v477 = vld [vmem:[#allocation6 + $0x68] sm:$0xff]
        %v478 = vld [vmem:[#allocation6 + $0x70] sm:$0xff]
        %v479 = vld [vmem:[#allocation6 + $0x78] sm:$0xff]
        %v480 = vld [vmem:[#allocation6 + $0x80] sm:$0xff]
        %v481 = vld [vmem:[#allocation6 + $0x88] sm:$0xff]
        %v482 = vld [vmem:[#allocation6 + $0x90] sm:$0xff]
        %v483 = vld [vmem:[#allocation6 + $0x98] sm:$0xff]
        %v484 = vld [vmem:[#allocation6 + $0xa0] sm:$0xff]
        %v485 = vld [vmem:[#allocation6 + $0xa8] sm:$0xff]
        %v486 = vld [vmem:[#allocation6 + $0xb0] sm:$0xff]
        %v487 = vld [vmem:[#allocation6 + $0xb8] sm:$0xff]
        %v488 = vld [vmem:[#allocation6 + $0xc0] sm:$0xff]
        %v489 = vld [vmem:[#allocation6 + $0xc8] sm:$0xff]
        %v490 = vld [vmem:[#allocation6 + $0xd0] sm:$0xff]
        %v491 = vld [vmem:[#allocation6 + $0xd8] sm:$0xff]
        %v492 = vld [vmem:[#allocation6 + $0xe0] sm:$0xff]
        %v493 = vld [vmem:[#allocation6 + $0xe8] sm:$0xff]
        %v494 = vld [vmem:[#allocation6 + $0xf0] sm:$0xff]
        %v495 = vld [vmem:[#allocation6 + $0xf8] sm:$0xff]
        %v496 = vld [vmem:[#allocation6 + $0x100] sm:$0xff]
        %v497 = vld [vmem:[#allocation6 + $0x108] sm:$0xff]
        %v498 = vld [vmem:[#allocation6 + $0x110] sm:$0xff]
        %v499 = vld [vmem:[#allocation6 + $0x118] sm:$0xff]
        %v500 = vld [vmem:[#allocation6 + $0x120] sm:$0xff]
        %v501 = vld [vmem:[#allocation6 + $0x128] sm:$0xff]
        %v502 = vld [vmem:[#allocation6 + $0x130] sm:$0xff]
        %v503 = vld [vmem:[#allocation6 + $0x138] sm:$0xff]
        %v504 = vld [vmem:[#allocation6 + $0x140] sm:$0xff]
        %v505 = vld [vmem:[#allocation6 + $0x148] sm:$0xff]
        %v506 = vld [vmem:[#allocation6 + $0x150] sm:$0xff]
        %v507 = vld [vmem:[#allocation6 + $0x158] sm:$0xff]
        %v508 = vld [vmem:[#allocation6 + $0x160] sm:$0xff]
        %v509 = vld [vmem:[#allocation6 + $0x168] sm:$0xff]
        %v510 = vld [vmem:[#allocation6 + $0x170] sm:$0xff]
        %v511 = vld [vmem:[#allocation6 + $0x178] sm:$0xff]
        %v512 = vld [vmem:[%s2] sm:$0x1]
        %v514 = vlaneseq
        %v515 = vshrl.u32 %v514, 7
        %v516 = vsub.s32 0, %v515
        %v517 = vrot.slane %v512, %v516
        %519 = vmatprep.subr.mxu0 0.0
        %520 = vmatpush1.msra.mxu0 %v464
        %521 = vmatprep.subr.mxu0 0.0
        %522 = vmatpush1.msra.mxu0 %v465
        %523 = vmatprep.subr.mxu0 0.0
        %524 = vmatpush1.msra.mxu0 %v466
        %525 = vmatprep.subr.mxu0 0.0
        %526 = vmatpush1.msra.mxu0 %v467
        %527 = vmatprep.subr.mxu0 0.0
        %528 = vmatpush1.msra.mxu0 %v468
        %529 = vmatprep.subr.mxu0 0.0
        %530 = vmatpush1.msra.mxu0 %v469
        %531 = vmatprep.subr.mxu0 0.0
        %532 = vmatpush1.msra.mxu0 %v470
        %533 = vmatprep.subr.mxu0 0.0
        %534 = vmatpush1.msra.mxu0 %v471
        %535 = vmatprep.subr.mxu0 0.0
        %536 = vmatpush1.msra.mxu0 %v472
        %537 = vmatprep.subr.mxu0 0.0
        %538 = vmatpush1.msra.mxu0 %v473
        %539 = vmatprep.subr.mxu0 0.0
        %540 = vmatpush1.msra.mxu0 %v474
        %541 = vmatprep.subr.mxu0 0.0
        %542 = vmatpush1.msra.mxu0 %v475
        %543 = vmatprep.subr.mxu0 0.0
        %544 = vmatpush1.msra.mxu0 %v476
        %545 = vmatprep.subr.mxu0 0.0
        %546 = vmatpush1.msra.mxu0 %v477
        %547 = vmatprep.subr.mxu0 0.0
        %548 = vmatpush1.msra.mxu0 %v478
        %549 = vmatprep.subr.mxu0 0.0
        %550 = vmatpush1.msra.mxu0 %v479
        %551 = vmatprep.subr.mxu0 0.0
        %552 = vmatpush1.msra.mxu0 %v480
        %553 = vmatprep.subr.mxu0 0.0
        %554 = vmatpush1.msra.mxu0 %v481
        %555 = vmatprep.subr.mxu0 0.0
        %556 = vmatpush1.msra.mxu0 %v482
        %557 = vmatprep.subr.mxu0 0.0
        %558 = vmatpush1.msra.mxu0 %v483
        %559 = vmatprep.subr.mxu0 0.0
        %560 = vmatpush1.msra.mxu0 %v484
        %561 = vmatprep.subr.mxu0 0.0
        %562 = vmatpush1.msra.mxu0 %v485
        %563 = vmatprep.subr.mxu0 0.0
        %564 = vmatpush1.msra.mxu0 %v486
        %565 = vmatprep.subr.mxu0 0.0
        %566 = vmatpush1.msra.mxu0 %v487
        %567 = vmatprep.subr.mxu0 0.0
        %568 = vmatpush1.msra.mxu0 %v488
        %569 = vmatprep.subr.mxu0 0.0
        %570 = vmatpush1.msra.mxu0 %v489
        %571 = vmatprep.subr.mxu0 0.0
        %572 = vmatpush1.msra.mxu0 %v490
        %573 = vmatprep.subr.mxu0 0.0
        %574 = vmatpush1.msra.mxu0 %v491
        %575 = vmatprep.subr.mxu0 0.0
        %576 = vmatpush1.msra.mxu0 %v492
        %577 = vmatprep.subr.mxu0 0.0
        %578 = vmatpush1.msra.mxu0 %v493
        %579 = vmatprep.subr.mxu0 0.0
        %580 = vmatpush1.msra.mxu0 %v494
        %581 = vmatprep.subr.mxu0 0.0
        %582 = vmatpush1.msra.mxu0 %v495
        %583 = vmatprep.mubr.f32.mxu0 %v432
        %584 = vmatmul.mubr.f32.gmra.mrb[0].mxu0 %v456
        %v585 = vpop.f32.mrb[0].mxu0
        %v586 = vadd.f32 %v517, %v585
        %v587 = vpop.f32.mrb[0].mxu0
        %588 = vdwg.mxu0
        %589 = vmatprep.subr.mxu0 0.0
        %590 = vmatpush1.msra.mxu0 %v496
        %591 = vmatprep.subr.mxu0 0.0
        %592 = vmatpush1.msra.mxu0 %v497
        %593 = vmatprep.subr.mxu0 0.0
        %594 = vmatpush1.msra.mxu0 %v498
        %595 = vmatprep.subr.mxu0 0.0
        %596 = vmatpush1.msra.mxu0 %v499
        %597 = vmatprep.subr.mxu0 0.0
        %598 = vmatpush1.msra.mxu0 %v500
        %599 = vmatprep.subr.mxu0 0.0
        %600 = vmatpush1.msra.mxu0 %v501
        %601 = vmatprep.subr.mxu0 0.0
        %602 = vmatpush1.msra.mxu0 %v502
        %603 = vmatprep.subr.mxu0 0.0
        %604 = vmatpush1.msra.mxu0 %v503
        %605 = vmatprep.subr.mxu0 0.0
        %606 = vmatpush1.msra.mxu0 %v504
        %607 = vmatprep.subr.mxu0 0.0
        %608 = vmatpush1.msra.mxu0 %v505
        %609 = vmatprep.subr.mxu0 0.0
        %610 = vmatpush1.msra.mxu0 %v506
        %611 = vmatprep.subr.mxu0 0.0
        %612 = vmatpush1.msra.mxu0 %v507
        %613 = vmatprep.subr.mxu0 0.0
        %614 = vmatpush1.msra.mxu0 %v508
        %615 = vmatprep.subr.mxu0 0.0
        %616 = vmatpush1.msra.mxu0 %v509
        %617 = vmatprep.subr.mxu0 0.0
        %618 = vmatpush1.msra.mxu0 %v510
        %619 = vmatprep.subr.mxu0 0.0
        %620 = vmatpush1.msra.mxu0 %v511
        %621 = vmatprep.subr.mxu0 0.0
        %622 = vmatpush1.msra.mxu0 0.0
        %623 = vmatprep.subr.mxu0 0.0
        %624 = vmatpush1.msra.mxu0 0.0
        %625 = vmatprep.subr.mxu0 0.0
        %626 = vmatpush1.msra.mxu0 0.0
        %627 = vmatprep.subr.mxu0 0.0
        %628 = vmatpush1.msra.mxu0 0.0
        %629 = vmatprep.subr.mxu0 0.0
        %630 = vmatpush1.msra.mxu0 0.0
        %631 = vmatprep.subr.mxu0 0.0
        %632 = vmatpush1.msra.mxu0 0.0
        %633 = vmatprep.subr.mxu0 0.0
        %634 = vmatpush1.msra.mxu0 0.0
        %635 = vmatprep.subr.mxu0 0.0
        %636 = vmatpush1.msra.mxu0 0.0
        %637 = vmatprep.subr.mxu0 0.0
        %638 = vmatpush1.msra.mxu0 0.0
        %639 = vmatprep.subr.mxu0 0.0
        %640 = vmatpush1.msra.mxu0 0.0
        %641 = vmatprep.subr.mxu0 0.0
        %642 = vmatpush1.msra.mxu0 0.0
        %643 = vmatprep.subr.mxu0 0.0
        %644 = vmatpush1.msra.mxu0 0.0
        %645 = vmatprep.subr.mxu0 0.0
        %646 = vmatpush1.msra.mxu0 0.0
        %647 = vmatprep.subr.mxu0 0.0
        %648 = vmatpush1.msra.mxu0 0.0
        %649 = vmatprep.subr.mxu0 0.0
        %650 = vmatpush1.msra.mxu0 0.0
        %651 = vmatprep.subr.mxu0 0.0
        %652 = vmatpush1.msra.mxu0 0.0
        %653 = vmatprep.mubr.f32.mxu0 0.0
        %654 = vmatmul.mubr.f32.gmra.mrb[0].mxu0 %v463
        %v655 = vpop.f32.mrb[0].mxu0
        %v656 = vadd.f32 %v586, %v655
        %v657 = vpop.f32.mrb[0].mxu0
        %658 = vdwg.mxu0
        %659 = vadd.xlane.f32.xlu0 %v656
        %v660 = vpop.xlane.xlu0 %659
        %v661 = vmul.f32 %v660, 0.03125
        %v662 = vmul.f32 %v656, %v656
        %663 = vadd.xlane.f32.xlu0 %v662
        %v664 = vpop.xlane.xlu0 %663
        %v665 = vmul.f32 %v664, 0.03125
        %v666 = vmul.f32 %v661, %v661
        %v667 = vsub.f32 %v665, %v666
        %v668 = vsub.f32 %v656, %v661
        %v669 = vadd.f32 %v667, 1e-05
        %v670 = vrsqrt.pop %v669
        %v671 = vmul.f32 %v668, %v670
        %v672 = vld [vmem:[%s3] sm:$0x1]
        %v674 = vlaneseq
        %v675 = vshrl.u32 %v674, 7
        %v676 = vsub.s32 0, %v675
        %v677 = vrot.slane %v672, %v676
        %v679 = vmul.f32 %v671, %v677
        %v680 = vld [vmem:[%s4] sm:$0x1]
        %v682 = vlaneseq
        %v683 = vshrl.u32 %v682, 7
        %v684 = vsub.s32 0, %v683
        %v685 = vrot.slane %v680, %v684
        %v687 = vadd.f32 %v679, %v685
        %v688 = vmax.f32 %v687, 0.0
        %v690 = vrot.slane %v688, 7
        %v692 = vsel %vm452, 0.0, %v690
        %v693 = vsel %vm455, 0.0, %v692
        %v694 = vrot.slane %v688, 1
        %v696 = vsel %vm459, %v694, 0.0
        %v697 = vsel %vm462, 0.0, %v696
        %v698 = vld [vmem:[#allocation8] sm:$0xff]
        %v699 = vld [vmem:[#allocation8 + $0x8] sm:$0xff]
        %v700 = vld [vmem:[#allocation8 + $0x10] sm:$0xff]
        %v701 = vld [vmem:[#allocation8 + $0x18] sm:$0xff]
        %v702 = vld [vmem:[#allocation8 + $0x20] sm:$0xff]
        %v703 = vld [vmem:[#allocation8 + $0x28] sm:$0xff]
        %v704 = vld [vmem:[#allocation8 + $0x30] sm:$0xff]
        %v705 = vld [vmem:[#allocation8 + $0x38] sm:$0xff]
        %v706 = vld [vmem:[#allocation8 + $0x40] sm:$0xff]
        %v707 = vld [vmem:[#allocation8 + $0x48] sm:$0xff]
        %v708 = vld [vmem:[#allocation8 + $0x50] sm:$0xff]
        %v709 = vld [vmem:[#allocation8 + $0x58] sm:$0xff]
        %v710 = vld [vmem:[#allocation8 + $0x60] sm:$0xff]
        %v711 = vld [vmem:[#allocation8 + $0x68] sm:$0xff]
        %v712 = vld [vmem:[#allocation8 + $0x70] sm:$0xff]
        %v713 = vld [vmem:[#allocation8 + $0x78] sm:$0xff]
        %v714 = vld [vmem:[#allocation8 + $0x80] sm:$0xff]
        %v715 = vld [vmem:[#allocation8 + $0x88] sm:$0xff]
        %v716 = vld [vmem:[#allocation8 + $0x90] sm:$0xff]
        %v717 = vld [vmem:[#allocation8 + $0x98] sm:$0xff]
        %v718 = vld [vmem:[#allocation8 + $0xa0] sm:$0xff]
        %v719 = vld [vmem:[#allocation8 + $0xa8] sm:$0xff]
        %v720 = vld [vmem:[#allocation8 + $0xb0] sm:$0xff]
        %v721 = vld [vmem:[#allocation8 + $0xb8] sm:$0xff]
        %v722 = vld [vmem:[#allocation8 + $0xc0] sm:$0xff]
        %v723 = vld [vmem:[#allocation8 + $0xc8] sm:$0xff]
        %v724 = vld [vmem:[#allocation8 + $0xd0] sm:$0xff]
        %v725 = vld [vmem:[#allocation8 + $0xd8] sm:$0xff]
        %v726 = vld [vmem:[#allocation8 + $0xe0] sm:$0xff]
        %v727 = vld [vmem:[#allocation8 + $0xe8] sm:$0xff]
        %v728 = vld [vmem:[#allocation8 + $0xf0] sm:$0xff]
        %v729 = vld [vmem:[#allocation8 + $0xf8] sm:$0xff]
        %v730 = vld [vmem:[#allocation8 + $0x100] sm:$0xff]
        %v731 = vld [vmem:[#allocation8 + $0x108] sm:$0xff]
        %v732 = vld [vmem:[#allocation8 + $0x110] sm:$0xff]
        %v733 = vld [vmem:[#allocation8 + $0x118] sm:$0xff]
        %v734 = vld [vmem:[#allocation8 + $0x120] sm:$0xff]
        %v735 = vld [vmem:[#allocation8 + $0x128] sm:$0xff]
        %v736 = vld [vmem:[#allocation8 + $0x130] sm:$0xff]
        %v737 = vld [vmem:[#allocation8 + $0x138] sm:$0xff]
        %v738 = vld [vmem:[#allocation8 + $0x140] sm:$0xff]
        %v739 = vld [vmem:[#allocation8 + $0x148] sm:$0xff]
        %v740 = vld [vmem:[#allocation8 + $0x150] sm:$0xff]
        %v741 = vld [vmem:[#allocation8 + $0x158] sm:$0xff]
        %v742 = vld [vmem:[#allocation8 + $0x160] sm:$0xff]
        %v743 = vld [vmem:[#allocation8 + $0x168] sm:$0xff]
        %v744 = vld [vmem:[#allocation8 + $0x170] sm:$0xff]
        %v745 = vld [vmem:[#allocation8 + $0x178] sm:$0xff]
        %v746 = vld [vmem:[%s6] sm:$0x1]
        %v748 = vlaneseq
        %v749 = vshrl.u32 %v748, 7
        %v750 = vsub.s32 0, %v749
        %v751 = vrot.slane %v746, %v750
        %753 = vmatprep.subr.mxu0 0.0
        %754 = vmatpush1.msra.mxu0 %v698
        %755 = vmatprep.subr.mxu0 0.0
        %756 = vmatpush1.msra.mxu0 %v699
        %757 = vmatprep.subr.mxu0 0.0
        %758 = vmatpush1.msra.mxu0 %v700
        %759 = vmatprep.subr.mxu0 0.0
        %760 = vmatpush1.msra.mxu0 %v701
        %761 = vmatprep.subr.mxu0 0.0
        %762 = vmatpush1.msra.mxu0 %v702
        %763 = vmatprep.subr.mxu0 0.0
        %764 = vmatpush1.msra.mxu0 %v703
        %765 = vmatprep.subr.mxu0 0.0
        %766 = vmatpush1.msra.mxu0 %v704
        %767 = vmatprep.subr.mxu0 0.0
        %768 = vmatpush1.msra.mxu0 %v705
        %769 = vmatprep.subr.mxu0 0.0
        %770 = vmatpush1.msra.mxu0 %v706
        %771 = vmatprep.subr.mxu0 0.0
        %772 = vmatpush1.msra.mxu0 %v707
        %773 = vmatprep.subr.mxu0 0.0
        %774 = vmatpush1.msra.mxu0 %v708
        %775 = vmatprep.subr.mxu0 0.0
        %776 = vmatpush1.msra.mxu0 %v709
        %777 = vmatprep.subr.mxu0 0.0
        %778 = vmatpush1.msra.mxu0 %v710
        %779 = vmatprep.subr.mxu0 0.0
        %780 = vmatpush1.msra.mxu0 %v711
        %781 = vmatprep.subr.mxu0 0.0
        %782 = vmatpush1.msra.mxu0 %v712
        %783 = vmatprep.subr.mxu0 0.0
        %784 = vmatpush1.msra.mxu0 %v713
        %785 = vmatprep.subr.mxu0 0.0
        %786 = vmatpush1.msra.mxu0 %v714
        %787 = vmatprep.subr.mxu0 0.0
        %788 = vmatpush1.msra.mxu0 %v715
        %789 = vmatprep.subr.mxu0 0.0
        %790 = vmatpush1.msra.mxu0 %v716
        %791 = vmatprep.subr.mxu0 0.0
        %792 = vmatpush1.msra.mxu0 %v717
        %793 = vmatprep.subr.mxu0 0.0
        %794 = vmatpush1.msra.mxu0 %v718
        %795 = vmatprep.subr.mxu0 0.0
        %796 = vmatpush1.msra.mxu0 %v719
        %797 = vmatprep.subr.mxu0 0.0
        %798 = vmatpush1.msra.mxu0 %v720
        %799 = vmatprep.subr.mxu0 0.0
        %800 = vmatpush1.msra.mxu0 %v721
        %801 = vmatprep.subr.mxu0 0.0
        %802 = vmatpush1.msra.mxu0 %v722
        %803 = vmatprep.subr.mxu0 0.0
        %804 = vmatpush1.msra.mxu0 %v723
        %805 = vmatprep.subr.mxu0 0.0
        %806 = vmatpush1.msra.mxu0 %v724
        %807 = vmatprep.subr.mxu0 0.0
        %808 = vmatpush1.msra.mxu0 %v725
        %809 = vmatprep.subr.mxu0 0.0
        %810 = vmatpush1.msra.mxu0 %v726
        %811 = vmatprep.subr.mxu0 0.0
        %812 = vmatpush1.msra.mxu0 %v727
        %813 = vmatprep.subr.mxu0 0.0
        %814 = vmatpush1.msra.mxu0 %v728
        %815 = vmatprep.subr.mxu0 0.0
        %816 = vmatpush1.msra.mxu0 %v729
        %817 = vmatprep.mubr.f32.mxu0 %v688
        %818 = vmatmul.mubr.f32.gmra.mrb[0].mxu0 %v693
        %v819 = vpop.f32.mrb[0].mxu0
        %v820 = vadd.f32 %v751, %v819
        %v821 = vpop.f32.mrb[0].mxu0
        %822 = vdwg.mxu0
        %823 = vmatprep.subr.mxu0 0.0
        %824 = vmatpush1.msra.mxu0 %v730
        %825 = vmatprep.subr.mxu0 0.0
        %826 = vmatpush1.msra.mxu0 %v731
        %827 = vmatprep.subr.mxu0 0.0
        %828 = vmatpush1.msra.mxu0 %v732
        %829 = vmatprep.subr.mxu0 0.0
        %830 = vmatpush1.msra.mxu0 %v733
        %831 = vmatprep.subr.mxu0 0.0
        %832 = vmatpush1.msra.mxu0 %v734
        %833 = vmatprep.subr.mxu0 0.0
        %834 = vmatpush1.msra.mxu0 %v735
        %835 = vmatprep.subr.mxu0 0.0
        %836 = vmatpush1.msra.mxu0 %v736
        %837 = vmatprep.subr.mxu0 0.0
        %838 = vmatpush1.msra.mxu0 %v737
        %839 = vmatprep.subr.mxu0 0.0
        %840 = vmatpush1.msra.mxu0 %v738
        %841 = vmatprep.subr.mxu0 0.0
        %842 = vmatpush1.msra.mxu0 %v739
        %843 = vmatprep.subr.mxu0 0.0
        %844 = vmatpush1.msra.mxu0 %v740
        %845 = vmatprep.subr.mxu0 0.0
        %846 = vmatpush1.msra.mxu0 %v741
        %847 = vmatprep.subr.mxu0 0.0
        %848 = vmatpush1.msra.mxu0 %v742
        %849 = vmatprep.subr.mxu0 0.0
        %850 = vmatpush1.msra.mxu0 %v743
        %851 = vmatprep.subr.mxu0 0.0
        %852 = vmatpush1.msra.mxu0 %v744
        %853 = vmatprep.subr.mxu0 0.0
        %854 = vmatpush1.msra.mxu0 %v745
        %855 = vmatprep.subr.mxu0 0.0
        %856 = vmatpush1.msra.mxu0 0.0
        %857 = vmatprep.subr.mxu0 0.0
        %858 = vmatpush1.msra.mxu0 0.0
        %859 = vmatprep.subr.mxu0 0.0
        %860 = vmatpush1.msra.mxu0 0.0
        %861 = vmatprep.subr.mxu0 0.0
        %862 = vmatpush1.msra.mxu0 0.0
        %863 = vmatprep.subr.mxu0 0.0
        %864 = vmatpush1.msra.mxu0 0.0
        %865 = vmatprep.subr.mxu0 0.0
        %866 = vmatpush1.msra.mxu0 0.0
        %867 = vmatprep.subr.mxu0 0.0
        %868 = vmatpush1.msra.mxu0 0.0
        %869 = vmatprep.subr.mxu0 0.0
        %870 = vmatpush1.msra.mxu0 0.0
        %871 = vmatprep.subr.mxu0 0.0
        %872 = vmatpush1.msra.mxu0 0.0
        %873 = vmatprep.subr.mxu0 0.0
        %874 = vmatpush1.msra.mxu0 0.0
        %875 = vmatprep.subr.mxu0 0.0
        %876 = vmatpush1.msra.mxu0 0.0
        %877 = vmatprep.subr.mxu0 0.0
        %878 = vmatpush1.msra.mxu0 0.0
        %879 = vmatprep.subr.mxu0 0.0
        %880 = vmatpush1.msra.mxu0 0.0
        %881 = vmatprep.subr.mxu0 0.0
        %882 = vmatpush1.msra.mxu0 0.0
        %883 = vmatprep.subr.mxu0 0.0
        %884 = vmatpush1.msra.mxu0 0.0
        %885 = vmatprep.subr.mxu0 0.0
        %886 = vmatpush1.msra.mxu0 0.0
        %887 = vmatprep.mubr.f32.mxu0 0.0
        %888 = vmatmul.mubr.f32.gmra.mrb[0].mxu0 %v697
        %v889 = vpop.f32.mrb[0].mxu0
        %v890 = vadd.f32 %v820, %v889
        %v891 = vpop.f32.mrb[0].mxu0
        %892 = vdwg.mxu0
        %893 = vadd.xlane.f32.xlu0 %v890
        %v894 = vpop.xlane.xlu0 %893
        %v895 = vmul.f32 %v894, 0.03125
        %v896 = vmul.f32 %v890, %v890
        %897 = vadd.xlane.f32.xlu0 %v896
        %v898 = vpop.xlane.xlu0 %897
        %v899 = vmul.f32 %v898, 0.03125
        %v900 = vmul.f32 %v895, %v895
        %v901 = vsub.f32 %v899, %v900
        %v902 = vsub.f32 %v890, %v895
        %v903 = vadd.f32 %v901, 1e-05
        %v904 = vrsqrt.pop %v903
        %v905 = vmul.f32 %v902, %v904
        %v906 = vld [vmem:[%s7] sm:$0x1]
        %v908 = vlaneseq
        %v909 = vshrl.u32 %v908, 7
        %v910 = vsub.s32 0, %v909
        %v911 = vrot.slane %v906, %v910
        %v913 = vmul.f32 %v905, %v911
        %v914 = vld [vmem:[%s8] sm:$0x1]
        %v916 = vlaneseq
        %v917 = vshrl.u32 %v916, 7
        %v918 = vsub.s32 0, %v917
        %v919 = vrot.slane %v914, %v918
        %v921 = vadd.f32 %v913, %v919
        %v922 = vmax.f32 %v921, 0.0
        %v923 = vld [vmem:[%s9] sm:$0x1]
        %v925 = vlaneseq
        %v926 = vshrl.u32 %v925, 7
        %v927 = vsub.s32 0, %v926
        %v928 = vrot.slane %v923, %v927
        %v930 = vmul.f32 %v922, %v928
        %931 = vadd.xlane.f32.xlu0 %v930
        %v932 = vpop.xlane.xlu0 %931
        %v933 = vld [vmem:[#allocation2] sm:$0x1]
        %935 = vset.pattern.permute.xlu0 0
        %936 = vperm.xlu0 %935, %v933
        %v937 = vpop.permute.xlu0 %936
        %v939 = vlaneseq
        %v940 = vshrl.u32 %v939, 7
        %v941 = vsub.s32 0, %v940
        %v942 = vrot.slane %v937, %v941
        %v943 = vadd.f32 %v932, %v942
        %v944 = vmax.f32 %v943, 0.0
        %v946 = vlaneseq
        %v947 = vand.u32 %v946, 127
        %v948 = vlaneseq
        %v949 = vshrl.u32 %v948, 7
        %v950 = vsub.s32 %v947, %v949
        %v951 = vrot.slane %v944, %v950
        %vm953 = vcmask 57344
        %954 = vst.msk [vmem:[%s431] sm:$0x1] %vm953, %v951
        %s955 = sand.u32 %s275, 1
        %s956 = scalar_lea.sflag [#allocation5], %s955
        %s957 = sand.u32 %s275, 1
        %s958 = scalar_lea.vmem [#allocation9], %s957
        // Predicated region
        $region77: #{tpu_custom_call.1} parent=63 // pred_check
          %p959 = pneg %p285
        $region78: #{tpu_custom_call.1} parent=63 // pred_check_branch
          %961 = sbr.rel (%p959) target = $region80
        $region79: #{tpu_custom_call.1} parent=63 // pred_region
          %s963 = ssub.s32 16, 16
          %964 = vsyncadd %s956, %s963
          %s965 = smul.addr %s31, 16
          %s966 = scalar_lea.hbm %s11, %s965
          %s968 = sshll.u32 %s958, 4
          %s969 = int_to_ptr.vmem [resolvable:$true] %s968
          %971 = dma.vmem_to_hbm [thread:$0]  %s969, 16, %s966, %s956
        $region80: #{tpu_custom_call.1} parent=63 // pred_fallthru
          _
      $region64: #{tpu_custom_call.1} parent=5 // pred_fallthru
        _
      %p972 = scmp.le.s32.totalorder 2, %s26
      // Predicated region
      $region81: #{tpu_custom_call.1} parent=5 // pred_check
        %p973 = pneg %p972
      $region82: #{tpu_custom_call.1} parent=5 // pred_check_branch
        %975 = sbr.rel (%p973) target = $region84
      $region83: #{tpu_custom_call.1} parent=5 // pred_region
        %s976 = ssub.s32 %s26, 2
        // Predicated region
        $region85: #{tpu_custom_call.1} parent=83 // pred_check
          %p977 = pneg %p291
        $region86: #{tpu_custom_call.1} parent=83 // pred_check_branch
          %979 = sbr.rel (%p977) target = $region88
        $region87: #{tpu_custom_call.1} parent=83 // pred_region
          %s980 = sand.u32 %s276, 1
          %s981 = scalar_lea.sflag [#allocation5], %s980
          %s982 = sand.u32 %s276, 1
          %s983 = scalar_lea.vmem [#allocation9], %s982
          %984 = dma.done %s981, 16
        $region88: #{tpu_custom_call.1} parent=83 // pred_fallthru
          _
      $region84: #{tpu_custom_call.1} parent=5 // pred_fallthru
        _
    $region6: #{tpu_custom_call.1} parent=1 // loop_footer
      %s30 = sadd.s32 1, %s26
    $region7: #{tpu_custom_call.1} parent=1 // loop_footer_branch
      %25 = sbr.rel target = $region3
    $region8: #{tpu_custom_call.1} parent=1 // loop_exit
      _
    %985 = vsyncpa [#allocation4], 1
    %s986 = scalar_lea.sflag [#allocation4], 1
    %987 = vsyncpa %s986, 1
    %988 = vsyncpa [#allocation7], 1
    %989 = vsyncpa [#allocation5], 1
    %s990 = scalar_lea.sflag [#allocation5], 1
    %991 = vsyncpa %s990, 1

</llo_original>
